<compile_context>
chip_gen: v7x
topology: tpu7x:2x2x1
jax: 0.10.0
libtpu: 0.0.40
codegen_flags: <defaults>
</compile_context>

<pallas_src>
import math

import jax
import jax.numpy as jnp
from jax.experimental import pallas as pl
from jax.experimental.pallas import tpu as pltpu


def gru_linear_kernel(x_ref, wih_ref, whh_ref, bi_ref, bhn_ref,
                      wlin_ref, blin_ref, y_ref):
    # x_ref: (T*B, I) time-major flattened; gate order r|z|n along lanes.
    TB, _ = x_ref.shape
    H = whh_ref.shape[0]
    B = y_ref.shape[0]
    T = TB // B

    w_hh = whh_ref[...]          # (H, 3H)
    b_hn = bhn_ref[...]          # (1, H)   = b_hh_n

    # One wide input projection for ALL timesteps; input-side biases folded in.
    gi_all = (jnp.dot(x_ref[...], wih_ref[...],
                      preferred_element_type=jnp.float32)
              + bi_ref[...])                                       # (T*B, 3H)

    h = jnp.zeros((B, H), jnp.float32)
    # Static T -> fully unrolled recurrence; h stays in vregs across steps.
    for t in range(T):
        gi = gi_all[t * B:(t + 1) * B]                             # (B, 3H) static slice
        gh = jnp.dot(h, w_hh, preferred_element_type=jnp.float32)  # (B, 3H)
        # r and z share one sigmoid over 2H lanes (EUP).
        rz = jax.nn.sigmoid(gi[:, :2 * H] + gh[:, :2 * H])
        r = rz[:, :H]
        z = rz[:, H:]
        n = jnp.tanh(gi[:, 2 * H:] + r * (gh[:, 2 * H:] + b_hn))
        h = (1.0 - z) * n + z * h

    y_ref[...] = (jnp.dot(h, wlin_ref[...], preferred_element_type=jnp.float32)
                  + blin_ref[...]).astype(y_ref.dtype)


def gru_linear_forward(x_btI, params):
    """x_btI: (B, T, I) batch_first like PyTorch. Returns (B, O)."""
    w_ih, w_hh, b_ih, b_hh, w_lin, b_lin = params
    B, T, I = x_btI.shape
    H = w_hh.shape[-1]
    O = w_lin.shape[-1]

    # Layout glue in plain JAX (one-time, tiny): time-major flatten and
    # gate concatenation r|z|n along the output dim; pre-sum biases where legal.
    x_tb = jnp.transpose(x_btI, (1, 0, 2)).reshape(T * B, I)            # (T*B, I)
    w_ih_cat = jnp.concatenate([w_ih[0], w_ih[1], w_ih[2]], axis=1)     # (I, 3H)
    w_hh_cat = jnp.concatenate([w_hh[0], w_hh[1], w_hh[2]], axis=1)     # (H, 3H)
    # r/z gates absorb b_ih + b_hh; n gate keeps only b_ih (b_hh_n sits inside r*(...)).
    b_i = jnp.concatenate([b_ih[0] + b_hh[0], b_ih[1] + b_hh[1], b_ih[2]],
                          axis=1)                                       # (1, 3H)
    b_hn = b_hh[2]                                                      # (1, H)

    vmem = lambda: pl.BlockSpec(memory_space=pltpu.MemorySpace.VMEM)
    return pl.pallas_call(
        gru_linear_kernel,
        out_shape=jax.ShapeDtypeStruct((B, O), jnp.float32),
        in_specs=[vmem() for _ in range(7)],
        out_specs=vmem(),
    )(x_tb, w_ih_cat, w_hh_cat, b_i, b_hn, w_lin, b_lin)


def init_params(key, inputs_count, outputs_count, hidden=64):
    """Deterministic init matching PyTorch GRU/Linear shapes (gate order r, z, n)."""
    ks = jax.random.split(key, 6)
    bound_g = 1.0 / math.sqrt(hidden)
    w_ih = jax.random.uniform(ks[0], (3, inputs_count, hidden),
                              minval=-bound_g, maxval=bound_g, dtype=jnp.float32)
    w_hh = jax.random.uniform(ks[1], (3, hidden, hidden),
                              minval=-bound_g, maxval=bound_g, dtype=jnp.float32)
    b_ih = jax.random.uniform(ks[2], (3, 1, hidden),
                              minval=-bound_g, maxval=bound_g, dtype=jnp.float32)
    b_hh = jax.random.uniform(ks[3], (3, 1, hidden),
                              minval=-bound_g, maxval=bound_g, dtype=jnp.float32)
    bound_l = 1.0 / math.sqrt(hidden)
    w_lin = jax.random.uniform(ks[4], (hidden, outputs_count),
                               minval=-bound_l, maxval=bound_l, dtype=jnp.float32)
    b_lin = jax.random.uniform(ks[5], (1, outputs_count),
                               minval=-bound_l, maxval=bound_l, dtype=jnp.float32)
    return (w_ih, w_hh, b_ih, b_hh, w_lin, b_lin)


def reference_forward(x_btI, params):
    """Pure-JAX reference of the PyTorch GRU + Linear forward."""
    w_ih, w_hh, b_ih, b_hh, w_lin, b_lin = params
    x_tbi = jnp.transpose(x_btI, (1, 0, 2))
    T, B, _ = x_tbi.shape
    H = w_hh.shape[-1]
    h = jnp.zeros((B, H), jnp.float32)
    for t in range(T):
        x_t = x_tbi[t]
        r = jax.nn.sigmoid(x_t @ w_ih[0] + b_ih[0] + h @ w_hh[0] + b_hh[0])
        z = jax.nn.sigmoid(x_t @ w_ih[1] + b_ih[1] + h @ w_hh[1] + b_hh[1])
        n = jnp.tanh(x_t @ w_ih[2] + b_ih[2] + r * (h @ w_hh[2] + b_hh[2]))
        h = (1.0 - z) * n + z * h
    return h @ w_lin + b_lin


if __name__ == "__main__":
    INPUTS, OUTPUTS = 4, 3
    B, T = 2, 8

    key = jax.random.PRNGKey(0)
    k_x, k_p = jax.random.split(key)
    x = jax.random.normal(k_x, (B, T, INPUTS), dtype=jnp.float32)
    params = init_params(k_p, INPUTS, OUTPUTS)

    y = gru_linear_forward(x, params)
    y = jax.block_until_ready(y)

    y_ref = reference_forward(x, params)
    assert y.shape == (B, OUTPUTS)
    assert jnp.allclose(y, y_ref, atol=1e-5, rtol=1e-5)

    print("KERNEL_OK")
</pallas_src>

<mosaic_0001>
module attributes {stable_mosaic.version = 11 : i64} {
  func.func @gru_linear_kernel(%arg0: memref<16x4xf32, #tpu.memory_space<vmem>>, %arg1: memref<4x192xf32, #tpu.memory_space<vmem>>, %arg2: memref<64x192xf32, #tpu.memory_space<vmem>>, %arg3: memref<1x192xf32, #tpu.memory_space<vmem>>, %arg4: memref<1x64xf32, #tpu.memory_space<vmem>>, %arg5: memref<64x3xf32, #tpu.memory_space<vmem>>, %arg6: memref<1x3xf32, #tpu.memory_space<vmem>>, %arg7: memref<2x3xf32, #tpu.memory_space<vmem>>) attributes {dimension_semantics = [], scalar_prefetch = 0 : i64, scratch_operands = 0 : i64, tpu.core_type = #tpu.core_type<tc>} {
    %c0 = arith.constant 0 : index
    %c0_0 = arith.constant 0 : index
    %0 = vector.load %arg2[%c0, %c0_0] : memref<64x192xf32, #tpu.memory_space<vmem>>, vector<64x192xf32>
    %c0_1 = arith.constant 0 : index
    %c0_2 = arith.constant 0 : index
    %1 = vector.load %arg4[%c0_1, %c0_2] : memref<1x64xf32, #tpu.memory_space<vmem>>, vector<1x64xf32>
    %c0_3 = arith.constant 0 : index
    %c0_4 = arith.constant 0 : index
    %2 = vector.load %arg0[%c0_3, %c0_4] : memref<16x4xf32, #tpu.memory_space<vmem>>, vector<16x4xf32>
    %c0_5 = arith.constant 0 : index
    %c0_6 = arith.constant 0 : index
    %3 = vector.load %arg1[%c0_5, %c0_6] : memref<4x192xf32, #tpu.memory_space<vmem>>, vector<4x192xf32>
    %cst = arith.constant dense<0.000000e+00> : vector<16x192xf32>
    %4 = tpu.matmul %2, %3, %cst {dimension_numbers = #tpu.dot_dimension_numbers<[1], [0], [0], [1], [0, 0, 1, 1], [], []>} : vector<16x4xf32>, vector<4x192xf32>, vector<16x192xf32> -> vector<16x192xf32>
    %c0_7 = arith.constant 0 : index
    %c0_8 = arith.constant 0 : index
    %5 = vector.load %arg3[%c0_7, %c0_8] : memref<1x192xf32, #tpu.memory_space<vmem>>, vector<1x192xf32>
    %6 = vector.broadcast %5 : vector<1x192xf32> to vector<16x192xf32>
    %7 = arith.addf %4, %6 : vector<16x192xf32>
    %cst_9 = arith.constant 0.000000e+00 : f32
    %8 = vector.broadcast %cst_9 : f32 to vector<2x64xf32>
    %9 = vector.extract_strided_slice %7 {offsets = [0, 0], sizes = [2, 192], strides = [1, 1]} : vector<16x192xf32> to vector<2x192xf32>
    %cst_10 = arith.constant dense<0.000000e+00> : vector<2x192xf32>
    %10 = tpu.matmul %8, %0, %cst_10 {dimension_numbers = #tpu.dot_dimension_numbers<[1], [0], [0], [1], [0, 0, 1, 1], [], []>} : vector<2x64xf32>, vector<64x192xf32>, vector<2x192xf32> -> vector<2x192xf32>
    %11 = vector.extract_strided_slice %9 {offsets = [0, 0], sizes = [2, 128], strides = [1, 1]} : vector<2x192xf32> to vector<2x128xf32>
    %12 = vector.extract_strided_slice %10 {offsets = [0, 0], sizes = [2, 128], strides = [1, 1]} : vector<2x192xf32> to vector<2x128xf32>
    %13 = arith.addf %11, %12 : vector<2x128xf32>
    %14 = arith.negf %13 : vector<2x128xf32>
    %15 = math.exp %14 : vector<2x128xf32>
    %cst_11 = arith.constant 1.000000e+00 : f32
    %16 = vector.broadcast %cst_11 : f32 to vector<2x128xf32>
    %17 = arith.addf %16, %15 : vector<2x128xf32>
    %18 = arith.divf %16, %17 : vector<2x128xf32>
    %19 = vector.extract_strided_slice %18 {offsets = [0, 0], sizes = [2, 64], strides = [1, 1]} : vector<2x128xf32> to vector<2x64xf32>
    %20 = vector.extract_strided_slice %18 {offsets = [0, 64], sizes = [2, 64], strides = [1, 1]} : vector<2x128xf32> to vector<2x64xf32>
    %21 = vector.extract_strided_slice %9 {offsets = [0, 128], sizes = [2, 64], strides = [1, 1]} : vector<2x192xf32> to vector<2x64xf32>
    %22 = vector.extract_strided_slice %10 {offsets = [0, 128], sizes = [2, 64], strides = [1, 1]} : vector<2x192xf32> to vector<2x64xf32>
    %23 = vector.broadcast %1 : vector<1x64xf32> to vector<2x64xf32>
    %24 = arith.addf %22, %23 : vector<2x64xf32>
    %25 = arith.mulf %19, %24 : vector<2x64xf32>
    %26 = arith.addf %21, %25 : vector<2x64xf32>
    %27 = math.tanh %26 : vector<2x64xf32>
    %cst_12 = arith.constant 1.000000e+00 : f32
    %28 = vector.broadcast %cst_12 : f32 to vector<2x64xf32>
    %29 = arith.subf %28, %20 : vector<2x64xf32>
    %30 = arith.mulf %29, %27 : vector<2x64xf32>
    %31 = arith.mulf %20, %8 : vector<2x64xf32>
    %32 = arith.addf %30, %31 : vector<2x64xf32>
    %33 = vector.extract_strided_slice %7 {offsets = [2, 0], sizes = [2, 192], strides = [1, 1]} : vector<16x192xf32> to vector<2x192xf32>
    %cst_13 = arith.constant dense<0.000000e+00> : vector<2x192xf32>
    %34 = tpu.matmul %32, %0, %cst_13 {dimension_numbers = #tpu.dot_dimension_numbers<[1], [0], [0], [1], [0, 0, 1, 1], [], []>} : vector<2x64xf32>, vector<64x192xf32>, vector<2x192xf32> -> vector<2x192xf32>
    %35 = vector.extract_strided_slice %33 {offsets = [0, 0], sizes = [2, 128], strides = [1, 1]} : vector<2x192xf32> to vector<2x128xf32>
    %36 = vector.extract_strided_slice %34 {offsets = [0, 0], sizes = [2, 128], strides = [1, 1]} : vector<2x192xf32> to vector<2x128xf32>
    %37 = arith.addf %35, %36 : vector<2x128xf32>
    %38 = arith.negf %37 : vector<2x128xf32>
    %39 = math.exp %38 : vector<2x128xf32>
    %cst_14 = arith.constant 1.000000e+00 : f32
    %40 = vector.broadcast %cst_14 : f32 to vector<2x128xf32>
    %41 = arith.addf %40, %39 : vector<2x128xf32>
    %42 = arith.divf %40, %41 : vector<2x128xf32>
    %43 = vector.extract_strided_slice %42 {offsets = [0, 0], sizes = [2, 64], strides = [1, 1]} : vector<2x128xf32> to vector<2x64xf32>
    %44 = vector.extract_strided_slice %42 {offsets = [0, 64], sizes = [2, 64], strides = [1, 1]} : vector<2x128xf32> to vector<2x64xf32>
    %45 = vector.extract_strided_slice %33 {offsets = [0, 128], sizes = [2, 64], strides = [1, 1]} : vector<2x192xf32> to vector<2x64xf32>
    %46 = vector.extract_strided_slice %34 {offsets = [0, 128], sizes = [2, 64], strides = [1, 1]} : vector<2x192xf32> to vector<2x64xf32>
    %47 = vector.broadcast %1 : vector<1x64xf32> to vector<2x64xf32>
    %48 = arith.addf %46, %47 : vector<2x64xf32>
    %49 = arith.mulf %43, %48 : vector<2x64xf32>
    %50 = arith.addf %45, %49 : vector<2x64xf32>
    %51 = math.tanh %50 : vector<2x64xf32>
    %cst_15 = arith.constant 1.000000e+00 : f32
    %52 = vector.broadcast %cst_15 : f32 to vector<2x64xf32>
    %53 = arith.subf %52, %44 : vector<2x64xf32>
    %54 = arith.mulf %53, %51 : vector<2x64xf32>
    %55 = arith.mulf %44, %32 : vector<2x64xf32>
    %56 = arith.addf %54, %55 : vector<2x64xf32>
    %57 = vector.extract_strided_slice %7 {offsets = [4, 0], sizes = [2, 192], strides = [1, 1]} : vector<16x192xf32> to vector<2x192xf32>
    %cst_16 = arith.constant dense<0.000000e+00> : vector<2x192xf32>
    %58 = tpu.matmul %56, %0, %cst_16 {dimension_numbers = #tpu.dot_dimension_numbers<[1], [0], [0], [1], [0, 0, 1, 1], [], []>} : vector<2x64xf32>, vector<64x192xf32>, vector<2x192xf32> -> vector<2x192xf32>
    %59 = vector.extract_strided_slice %57 {offsets = [0, 0], sizes = [2, 128], strides = [1, 1]} : vector<2x192xf32> to vector<2x128xf32>
    %60 = vector.extract_strided_slice %58 {offsets = [0, 0], sizes = [2, 128], strides = [1, 1]} : vector<2x192xf32> to vector<2x128xf32>
    %61 = arith.addf %59, %60 : vector<2x128xf32>
    %62 = arith.negf %61 : vector<2x128xf32>
    %63 = math.exp %62 : vector<2x128xf32>
    %cst_17 = arith.constant 1.000000e+00 : f32
    %64 = vector.broadcast %cst_17 : f32 to vector<2x128xf32>
    %65 = arith.addf %64, %63 : vector<2x128xf32>
    %66 = arith.divf %64, %65 : vector<2x128xf32>
    %67 = vector.extract_strided_slice %66 {offsets = [0, 0], sizes = [2, 64], strides = [1, 1]} : vector<2x128xf32> to vector<2x64xf32>
    %68 = vector.extract_strided_slice %66 {offsets = [0, 64], sizes = [2, 64], strides = [1, 1]} : vector<2x128xf32> to vector<2x64xf32>
    %69 = vector.extract_strided_slice %57 {offsets = [0, 128], sizes = [2, 64], strides = [1, 1]} : vector<2x192xf32> to vector<2x64xf32>
    %70 = vector.extract_strided_slice %58 {offsets = [0, 128], sizes = [2, 64], strides = [1, 1]} : vector<2x192xf32> to vector<2x64xf32>
    %71 = vector.broadcast %1 : vector<1x64xf32> to vector<2x64xf32>
    %72 = arith.addf %70, %71 : vector<2x64xf32>
    %73 = arith.mulf %67, %72 : vector<2x64xf32>
    %74 = arith.addf %69, %73 : vector<2x64xf32>
    %75 = math.tanh %74 : vector<2x64xf32>
    %cst_18 = arith.constant 1.000000e+00 : f32
    %76 = vector.broadcast %cst_18 : f32 to vector<2x64xf32>
    %77 = arith.subf %76, %68 : vector<2x64xf32>
    %78 = arith.mulf %77, %75 : vector<2x64xf32>
    %79 = arith.mulf %68, %56 : vector<2x64xf32>
    %80 = arith.addf %78, %79 : vector<2x64xf32>
    %81 = vector.extract_strided_slice %7 {offsets = [6, 0], sizes = [2, 192], strides = [1, 1]} : vector<16x192xf32> to vector<2x192xf32>
    %cst_19 = arith.constant dense<0.000000e+00> : vector<2x192xf32>
    %82 = tpu.matmul %80, %0, %cst_19 {dimension_numbers = #tpu.dot_dimension_numbers<[1], [0], [0], [1], [0, 0, 1, 1], [], []>} : vector<2x64xf32>, vector<64x192xf32>, vector<2x192xf32> -> vector<2x192xf32>
    %83 = vector.extract_strided_slice %81 {offsets = [0, 0], sizes = [2, 128], strides = [1, 1]} : vector<2x192xf32> to vector<2x128xf32>
    %84 = vector.extract_strided_slice %82 {offsets = [0, 0], sizes = [2, 128], strides = [1, 1]} : vector<2x192xf32> to vector<2x128xf32>
    %85 = arith.addf %83, %84 : vector<2x128xf32>
    %86 = arith.negf %85 : vector<2x128xf32>
    %87 = math.exp %86 : vector<2x128xf32>
    %cst_20 = arith.constant 1.000000e+00 : f32
    %88 = vector.broadcast %cst_20 : f32 to vector<2x128xf32>
    %89 = arith.addf %88, %87 : vector<2x128xf32>
    %90 = arith.divf %88, %89 : vector<2x128xf32>
    %91 = vector.extract_strided_slice %90 {offsets = [0, 0], sizes = [2, 64], strides = [1, 1]} : vector<2x128xf32> to vector<2x64xf32>
    %92 = vector.extract_strided_slice %90 {offsets = [0, 64], sizes = [2, 64], strides = [1, 1]} : vector<2x128xf32> to vector<2x64xf32>
    %93 = vector.extract_strided_slice %81 {offsets = [0, 128], sizes = [2, 64], strides = [1, 1]} : vector<2x192xf32> to vector<2x64xf32>
    %94 = vector.extract_strided_slice %82 {offsets = [0, 128], sizes = [2, 64], strides = [1, 1]} : vector<2x192xf32> to vector<2x64xf32>
    %95 = vector.broadcast %1 : vector<1x64xf32> to vector<2x64xf32>
    %96 = arith.addf %94, %95 : vector<2x64xf32>
    %97 = arith.mulf %91, %96 : vector<2x64xf32>
    %98 = arith.addf %93, %97 : vector<2x64xf32>
    %99 = math.tanh %98 : vector<2x64xf32>
    %cst_21 = arith.constant 1.000000e+00 : f32
    %100 = vector.broadcast %cst_21 : f32 to vector<2x64xf32>
    %101 = arith.subf %100, %92 : vector<2x64xf32>
    %102 = arith.mulf %101, %99 : vector<2x64xf32>
    %103 = arith.mulf %92, %80 : vector<2x64xf32>
    %104 = arith.addf %102, %103 : vector<2x64xf32>
    %105 = vector.extract_strided_slice %7 {offsets = [8, 0], sizes = [2, 192], strides = [1, 1]} : vector<16x192xf32> to vector<2x192xf32>
    %cst_22 = arith.constant dense<0.000000e+00> : vector<2x192xf32>
    %106 = tpu.matmul %104, %0, %cst_22 {dimension_numbers = #tpu.dot_dimension_numbers<[1], [0], [0], [1], [0, 0, 1, 1], [], []>} : vector<2x64xf32>, vector<64x192xf32>, vector<2x192xf32> -> vector<2x192xf32>
    %107 = vector.extract_strided_slice %105 {offsets = [0, 0], sizes = [2, 128], strides = [1, 1]} : vector<2x192xf32> to vector<2x128xf32>
    %108 = vector.extract_strided_slice %106 {offsets = [0, 0], sizes = [2, 128], strides = [1, 1]} : vector<2x192xf32> to vector<2x128xf32>
    %109 = arith.addf %107, %108 : vector<2x128xf32>
    %110 = arith.negf %109 : vector<2x128xf32>
    %111 = math.exp %110 : vector<2x128xf32>
    %cst_23 = arith.constant 1.000000e+00 : f32
    %112 = vector.broadcast %cst_23 : f32 to vector<2x128xf32>
    %113 = arith.addf %112, %111 : vector<2x128xf32>
    %114 = arith.divf %112, %113 : vector<2x128xf32>
    %115 = vector.extract_strided_slice %114 {offsets = [0, 0], sizes = [2, 64], strides = [1, 1]} : vector<2x128xf32> to vector<2x64xf32>
    %116 = vector.extract_strided_slice %114 {offsets = [0, 64], sizes = [2, 64], strides = [1, 1]} : vector<2x128xf32> to vector<2x64xf32>
    %117 = vector.extract_strided_slice %105 {offsets = [0, 128], sizes = [2, 64], strides = [1, 1]} : vector<2x192xf32> to vector<2x64xf32>
    %118 = vector.extract_strided_slice %106 {offsets = [0, 128], sizes = [2, 64], strides = [1, 1]} : vector<2x192xf32> to vector<2x64xf32>
    %119 = vector.broadcast %1 : vector<1x64xf32> to vector<2x64xf32>
    %120 = arith.addf %118, %119 : vector<2x64xf32>
    %121 = arith.mulf %115, %120 : vector<2x64xf32>
    %122 = arith.addf %117, %121 : vector<2x64xf32>
    %123 = math.tanh %122 : vector<2x64xf32>
    %cst_24 = arith.constant 1.000000e+00 : f32
    %124 = vector.broadcast %cst_24 : f32 to vector<2x64xf32>
    %125 = arith.subf %124, %116 : vector<2x64xf32>
    %126 = arith.mulf %125, %123 : vector<2x64xf32>
    %127 = arith.mulf %116, %104 : vector<2x64xf32>
    %128 = arith.addf %126, %127 : vector<2x64xf32>
    %129 = vector.extract_strided_slice %7 {offsets = [10, 0], sizes = [2, 192], strides = [1, 1]} : vector<16x192xf32> to vector<2x192xf32>
    %cst_25 = arith.constant dense<0.000000e+00> : vector<2x192xf32>
    %130 = tpu.matmul %128, %0, %cst_25 {dimension_numbers = #tpu.dot_dimension_numbers<[1], [0], [0], [1], [0, 0, 1, 1], [], []>} : vector<2x64xf32>, vector<64x192xf32>, vector<2x192xf32> -> vector<2x192xf32>
    %131 = vector.extract_strided_slice %129 {offsets = [0, 0], sizes = [2, 128], strides = [1, 1]} : vector<2x192xf32> to vector<2x128xf32>
    %132 = vector.extract_strided_slice %130 {offsets = [0, 0], sizes = [2, 128], strides = [1, 1]} : vector<2x192xf32> to vector<2x128xf32>
    %133 = arith.addf %131, %132 : vector<2x128xf32>
    %134 = arith.negf %133 : vector<2x128xf32>
    %135 = math.exp %134 : vector<2x128xf32>
    %cst_26 = arith.constant 1.000000e+00 : f32
    %136 = vector.broadcast %cst_26 : f32 to vector<2x128xf32>
    %137 = arith.addf %136, %135 : vector<2x128xf32>
    %138 = arith.divf %136, %137 : vector<2x128xf32>
    %139 = vector.extract_strided_slice %138 {offsets = [0, 0], sizes = [2, 64], strides = [1, 1]} : vector<2x128xf32> to vector<2x64xf32>
    %140 = vector.extract_strided_slice %138 {offsets = [0, 64], sizes = [2, 64], strides = [1, 1]} : vector<2x128xf32> to vector<2x64xf32>
    %141 = vector.extract_strided_slice %129 {offsets = [0, 128], sizes = [2, 64], strides = [1, 1]} : vector<2x192xf32> to vector<2x64xf32>
    %142 = vector.extract_strided_slice %130 {offsets = [0, 128], sizes = [2, 64], strides = [1, 1]} : vector<2x192xf32> to vector<2x64xf32>
    %143 = vector.broadcast %1 : vector<1x64xf32> to vector<2x64xf32>
    %144 = arith.addf %142, %143 : vector<2x64xf32>
    %145 = arith.mulf %139, %144 : vector<2x64xf32>
    %146 = arith.addf %141, %145 : vector<2x64xf32>
    %147 = math.tanh %146 : vector<2x64xf32>
    %cst_27 = arith.constant 1.000000e+00 : f32
    %148 = vector.broadcast %cst_27 : f32 to vector<2x64xf32>
    %149 = arith.subf %148, %140 : vector<2x64xf32>
    %150 = arith.mulf %149, %147 : vector<2x64xf32>
    %151 = arith.mulf %140, %128 : vector<2x64xf32>
    %152 = arith.addf %150, %151 : vector<2x64xf32>
    %153 = vector.extract_strided_slice %7 {offsets = [12, 0], sizes = [2, 192], strides = [1, 1]} : vector<16x192xf32> to vector<2x192xf32>
    %cst_28 = arith.constant dense<0.000000e+00> : vector<2x192xf32>
    %154 = tpu.matmul %152, %0, %cst_28 {dimension_numbers = #tpu.dot_dimension_numbers<[1], [0], [0], [1], [0, 0, 1, 1], [], []>} : vector<2x64xf32>, vector<64x192xf32>, vector<2x192xf32> -> vector<2x192xf32>
    %155 = vector.extract_strided_slice %153 {offsets = [0, 0], sizes = [2, 128], strides = [1, 1]} : vector<2x192xf32> to vector<2x128xf32>
    %156 = vector.extract_strided_slice %154 {offsets = [0, 0], sizes = [2, 128], strides = [1, 1]} : vector<2x192xf32> to vector<2x128xf32>
    %157 = arith.addf %155, %156 : vector<2x128xf32>
    %158 = arith.negf %157 : vector<2x128xf32>
    %159 = math.exp %158 : vector<2x128xf32>
    %cst_29 = arith.constant 1.000000e+00 : f32
    %160 = vector.broadcast %cst_29 : f32 to vector<2x128xf32>
    %161 = arith.addf %160, %159 : vector<2x128xf32>
    %162 = arith.divf %160, %161 : vector<2x128xf32>
    %163 = vector.extract_strided_slice %162 {offsets = [0, 0], sizes = [2, 64], strides = [1, 1]} : vector<2x128xf32> to vector<2x64xf32>
    %164 = vector.extract_strided_slice %162 {offsets = [0, 64], sizes = [2, 64], strides = [1, 1]} : vector<2x128xf32> to vector<2x64xf32>
    %165 = vector.extract_strided_slice %153 {offsets = [0, 128], sizes = [2, 64], strides = [1, 1]} : vector<2x192xf32> to vector<2x64xf32>
    %166 = vector.extract_strided_slice %154 {offsets = [0, 128], sizes = [2, 64], strides = [1, 1]} : vector<2x192xf32> to vector<2x64xf32>
    %167 = vector.broadcast %1 : vector<1x64xf32> to vector<2x64xf32>
    %168 = arith.addf %166, %167 : vector<2x64xf32>
    %169 = arith.mulf %163, %168 : vector<2x64xf32>
    %170 = arith.addf %165, %169 : vector<2x64xf32>
    %171 = math.tanh %170 : vector<2x64xf32>
    %cst_30 = arith.constant 1.000000e+00 : f32
    %172 = vector.broadcast %cst_30 : f32 to vector<2x64xf32>
    %173 = arith.subf %172, %164 : vector<2x64xf32>
    %174 = arith.mulf %173, %171 : vector<2x64xf32>
    %175 = arith.mulf %164, %152 : vector<2x64xf32>
    %176 = arith.addf %174, %175 : vector<2x64xf32>
    %177 = vector.extract_strided_slice %7 {offsets = [14, 0], sizes = [2, 192], strides = [1, 1]} : vector<16x192xf32> to vector<2x192xf32>
    %cst_31 = arith.constant dense<0.000000e+00> : vector<2x192xf32>
    %178 = tpu.matmul %176, %0, %cst_31 {dimension_numbers = #tpu.dot_dimension_numbers<[1], [0], [0], [1], [0, 0, 1, 1], [], []>} : vector<2x64xf32>, vector<64x192xf32>, vector<2x192xf32> -> vector<2x192xf32>
    %179 = vector.extract_strided_slice %177 {offsets = [0, 0], sizes = [2, 128], strides = [1, 1]} : vector<2x192xf32> to vector<2x128xf32>
    %180 = vector.extract_strided_slice %178 {offsets = [0, 0], sizes = [2, 128], strides = [1, 1]} : vector<2x192xf32> to vector<2x128xf32>
    %181 = arith.addf %179, %180 : vector<2x128xf32>
    %182 = arith.negf %181 : vector<2x128xf32>
    %183 = math.exp %182 : vector<2x128xf32>
    %cst_32 = arith.constant 1.000000e+00 : f32
    %184 = vector.broadcast %cst_32 : f32 to vector<2x128xf32>
    %185 = arith.addf %184, %183 : vector<2x128xf32>
    %186 = arith.divf %184, %185 : vector<2x128xf32>
    %187 = vector.extract_strided_slice %186 {offsets = [0, 0], sizes = [2, 64], strides = [1, 1]} : vector<2x128xf32> to vector<2x64xf32>
    %188 = vector.extract_strided_slice %186 {offsets = [0, 64], sizes = [2, 64], strides = [1, 1]} : vector<2x128xf32> to vector<2x64xf32>
    %189 = vector.extract_strided_slice %177 {offsets = [0, 128], sizes = [2, 64], strides = [1, 1]} : vector<2x192xf32> to vector<2x64xf32>
    %190 = vector.extract_strided_slice %178 {offsets = [0, 128], sizes = [2, 64], strides = [1, 1]} : vector<2x192xf32> to vector<2x64xf32>
    %191 = vector.broadcast %1 : vector<1x64xf32> to vector<2x64xf32>
    %192 = arith.addf %190, %191 : vector<2x64xf32>
    %193 = arith.mulf %187, %192 : vector<2x64xf32>
    %194 = arith.addf %189, %193 : vector<2x64xf32>
    %195 = math.tanh %194 : vector<2x64xf32>
    %cst_33 = arith.constant 1.000000e+00 : f32
    %196 = vector.broadcast %cst_33 : f32 to vector<2x64xf32>
    %197 = arith.subf %196, %188 : vector<2x64xf32>
    %198 = arith.mulf %197, %195 : vector<2x64xf32>
    %199 = arith.mulf %188, %176 : vector<2x64xf32>
    %200 = arith.addf %198, %199 : vector<2x64xf32>
    %c0_34 = arith.constant 0 : index
    %c0_35 = arith.constant 0 : index
    %201 = vector.load %arg5[%c0_34, %c0_35] : memref<64x3xf32, #tpu.memory_space<vmem>>, vector<64x3xf32>
    %cst_36 = arith.constant dense<0.000000e+00> : vector<2x3xf32>
    %202 = tpu.matmul %200, %201, %cst_36 {dimension_numbers = #tpu.dot_dimension_numbers<[1], [0], [0], [1], [0, 0, 1, 1], [], []>} : vector<2x64xf32>, vector<64x3xf32>, vector<2x3xf32> -> vector<2x3xf32>
    %c0_37 = arith.constant 0 : index
    %c0_38 = arith.constant 0 : index
    %203 = vector.load %arg6[%c0_37, %c0_38] : memref<1x3xf32, #tpu.memory_space<vmem>>, vector<1x3xf32>
    %204 = vector.broadcast %203 : vector<1x3xf32> to vector<2x3xf32>
    %205 = arith.addf %202, %204 : vector<2x3xf32>
    %c0_39 = arith.constant 0 : index
    %c0_40 = arith.constant 0 : index
    %206 = vector.load %arg7[%c0_39, %c0_40] : memref<2x3xf32, #tpu.memory_space<vmem>>, vector<2x3xf32>
    tpu.vector_store %arg7[%c0_39, %c0_40], %205 {strides = array<i32>} : memref<2x3xf32, #tpu.memory_space<vmem>>, vector<2x3xf32>,
    return
  }
}

</mosaic_0001>

<llo_original>
// kernel: tpu_custom_call.1
$region0: #{tpu_custom_call.1}
  #allocation0 [shape = 'u32[]', space=smem, size = 0x4, offset = 0x4, fixed_abs, tag = 'smem constant byte address 0x4 - core index']
  #allocation1 [shape = 'u32[144,128]{1,0:T(1,128)}', space=vmem, size = 0x12000, scoped, tag = 'internal scratch']
  %s0 = inlined_call_operand.vmem [shape: f32[16,4], index: 0, kind: input, shape index: {}]
  %s1 = inlined_call_operand.vmem [shape: f32[4,192], index: 1, kind: input, shape index: {}]
  %s2 = inlined_call_operand.hbm [shape: f32[64,192], index: 2, kind: input, shape index: {}]
  %s3 = inlined_call_operand.vmem [shape: f32[1,192], index: 3, kind: input, shape index: {}]
  %s4 = inlined_call_operand.vmem [shape: f32[1,64], index: 4, kind: input, shape index: {}]
  %s5 = inlined_call_operand.vmem [shape: f32[64,3], index: 5, kind: input, shape index: {}]
  %s6 = inlined_call_operand.vmem [shape: f32[1,3], index: 6, kind: input, shape index: {}]
  %s7 = inlined_call_operand.hbm [shape: f32[2,3], index: 7, kind: output, shape index: {}]
  %s8 = sld [smem:[#allocation0]]
  $region42: #{tpu_custom_call.1} parent=0
    _
  %s10 = ssub.s32 1, %s8
  %s11 = scalar_select 0, %s10, %s8
  $region1: #{tpu_custom_call.1} parent=0
    #allocation2 [shape = 'u8[65536]{0}', space=vmem, size = 0x10000, scoped, tag = 'input window, operand 2, single buffered']
    #allocation3 [shape = 's32[1]{0}', space=sflag, size = 0x4, scoped, tag = 'scoped memory for tpu_custom_call.1']
    #allocation4 [shape = 's32[1]{0}', space=sflag, size = 0x4, scoped, tag = 'scoped memory for tpu_custom_call.1']
    #allocation5 [shape = 'u8[1024]{0}', space=vmem, size = 0x400, scoped, tag = 'output window, operand 0, single buffered']
    %12 = vsyncpa [#allocation3], 0
    %13 = vsyncpa [#allocation4], 0
    // Predicated region
    $region2: #{tpu_custom_call.1} parent=1 // pred_check
      _
    $region3: #{tpu_custom_call.1} parent=1 // pred_check_branch
      %15 = sbr.rel (0) target = $region5
    $region4: #{tpu_custom_call.1} parent=1 // pred_region
      _
    $region5: #{tpu_custom_call.1} parent=1 // pred_fallthru
      _
    // Predicated region
    $region6: #{tpu_custom_call.1} parent=1 // pred_check
      _
    $region7: #{tpu_custom_call.1} parent=1 // pred_check_branch
      %17 = sbr.rel (0) target = $region9
    $region8: #{tpu_custom_call.1} parent=1 // pred_region
      _
    $region9: #{tpu_custom_call.1} parent=1 // pred_fallthru
      _
    // Predicated region
    $region10: #{tpu_custom_call.1} parent=1 // pred_check
      _
    $region11: #{tpu_custom_call.1} parent=1 // pred_check_branch
      %19 = sbr.rel (0) target = $region13
    $region12: #{tpu_custom_call.1} parent=1 // pred_region
      %s21 = ssub.s32 2048, 2048
      %22 = vsyncadd [#allocation3], %s21
      %s23 = sshll.u32 [#allocation2], 4
      %s24 = int_to_ptr.vmem [resolvable:$true] %s23
      %29 = dma.hbm_to_vmem [thread:$0]  %s2, 2048, %s24, [#allocation3], 256, 256, 16
    $region13: #{tpu_custom_call.1} parent=1 // pred_fallthru
      _
    // Predicated region
    $region14: #{tpu_custom_call.1} parent=1 // pred_check
      _
    $region15: #{tpu_custom_call.1} parent=1 // pred_check_branch
      %31 = sbr.rel (0) target = $region17
    $region16: #{tpu_custom_call.1} parent=1 // pred_region
      _
    $region17: #{tpu_custom_call.1} parent=1 // pred_fallthru
      _
    // Predicated region
    $region18: #{tpu_custom_call.1} parent=1 // pred_check
      _
    $region19: #{tpu_custom_call.1} parent=1 // pred_check_branch
      %33 = sbr.rel (0) target = $region21
    $region20: #{tpu_custom_call.1} parent=1 // pred_region
      _
    $region21: #{tpu_custom_call.1} parent=1 // pred_fallthru
      _
    // Predicated region
    $region22: #{tpu_custom_call.1} parent=1 // pred_check
      _
    $region23: #{tpu_custom_call.1} parent=1 // pred_check_branch
      %35 = sbr.rel (0) target = $region25
    $region24: #{tpu_custom_call.1} parent=1 // pred_region
      _
    $region25: #{tpu_custom_call.1} parent=1 // pred_fallthru
      _
    // Predicated region
    $region26: #{tpu_custom_call.1} parent=1 // pred_check
      _
    $region27: #{tpu_custom_call.1} parent=1 // pred_check_branch
      %37 = sbr.rel (0) target = $region29
    $region28: #{tpu_custom_call.1} parent=1 // pred_region
      _
    $region29: #{tpu_custom_call.1} parent=1 // pred_fallthru
      _
    // Predicated region
    $region30: #{tpu_custom_call.1} parent=1 // pred_check
      _
    $region31: #{tpu_custom_call.1} parent=1 // pred_check_branch
      %39 = sbr.rel (0) target = $region33
    $region32: #{tpu_custom_call.1} parent=1 // pred_region
      %40 = dma.done [#allocation3], 2048
    $region33: #{tpu_custom_call.1} parent=1 // pred_fallthru
      _
    %v41 = vld [vmem:[#allocation2] sm:$0xff]
    %v42 = vld [vmem:[#allocation2 + $0x8] sm:$0xff]
    %v43 = vld [vmem:[#allocation2 + $0x10] sm:$0xff]
    %v44 = vld [vmem:[#allocation2 + $0x18] sm:$0xff]
    %v45 = vld [vmem:[#allocation2 + $0x20] sm:$0xff]
    %v46 = vld [vmem:[#allocation2 + $0x28] sm:$0xff]
    %v47 = vld [vmem:[#allocation2 + $0x30] sm:$0xff]
    %v48 = vld [vmem:[#allocation2 + $0x38] sm:$0xff]
    %v49 = vld [vmem:[#allocation2 + $0x40] sm:$0xff]
    %v50 = vld [vmem:[#allocation2 + $0x48] sm:$0xff]
    %v51 = vld [vmem:[#allocation2 + $0x50] sm:$0xff]
    %v52 = vld [vmem:[#allocation2 + $0x58] sm:$0xff]
    %v53 = vld [vmem:[#allocation2 + $0x60] sm:$0xff]
    %v54 = vld [vmem:[#allocation2 + $0x68] sm:$0xff]
    %v55 = vld [vmem:[#allocation2 + $0x70] sm:$0xff]
    %v56 = vld [vmem:[#allocation2 + $0x78] sm:$0xff]
    %v57 = vld [vmem:[%s4] sm:$0x1]
    %v58 = vld [vmem:[%s0] sm:$0xff]
    %v59 = vld [vmem:[%s0 + $0x8] sm:$0xff]
    %v60 = vld [vmem:[%s1] sm:$0xff]
    %v61 = vld [vmem:[%s3] sm:$0x3]
    %v63 = vlaneseq
    %v64 = vshrl.u32 %v63, 7
    %v65 = vsub.s32 0, %v64
    %v66 = vrot.slane %v61, %v65
    %v67 = vlaneseq
    %v68 = vshrl.u32 %v67, 7
    %v69 = vsub.s32 1, %v68
    %v70 = vrot.slane %v61, %v69
    %v74 = vcombine.high %v60, %v60
    %vm75 = vcmask 31744
    %v77 = vsel %vm75, %v58, 0
    %v80 = vsel %vm75, %v59, 0
    %vm82 = vcmask 1043456
    %v83 = vsel %vm82, %v60, 0
    %v85 = vsel %vm82, %v74, 0
    %87 = vmatprep.subr.mxu0 %v85
    %88 = vmatpush1.msra.mxu0 %v83
    %89 = vmatprep.subr.mxu0 0.0
    %90 = vmatpush1.msra.mxu0 0.0
    %91 = vmatprep.subr.mxu0 0.0
    %92 = vmatpush1.msra.mxu0 0.0
    %93 = vmatprep.subr.mxu0 0.0
    %94 = vmatpush1.msra.mxu0 0.0
    %95 = vmatprep.subr.mxu0 0.0
    %96 = vmatpush1.msra.mxu0 0.0
    %97 = vmatprep.subr.mxu0 0.0
    %98 = vmatpush1.msra.mxu0 0.0
    %99 = vmatprep.subr.mxu0 0.0
    %100 = vmatpush1.msra.mxu0 0.0
    %101 = vmatprep.subr.mxu0 0.0
    %102 = vmatpush1.msra.mxu0 0.0
    %103 = vmatprep.subr.mxu0 0.0
    %104 = vmatpush1.msra.mxu0 0.0
    %105 = vmatprep.subr.mxu0 0.0
    %106 = vmatpush1.msra.mxu0 0.0
    %107 = vmatprep.subr.mxu0 0.0
    %108 = vmatpush1.msra.mxu0 0.0
    %109 = vmatprep.subr.mxu0 0.0
    %110 = vmatpush1.msra.mxu0 0.0
    %111 = vmatprep.subr.mxu0 0.0
    %112 = vmatpush1.msra.mxu0 0.0
    %113 = vmatprep.subr.mxu0 0.0
    %114 = vmatpush1.msra.mxu0 0.0
    %115 = vmatprep.subr.mxu0 0.0
    %116 = vmatpush1.msra.mxu0 0.0
    %117 = vmatprep.subr.mxu0 0.0
    %118 = vmatpush1.msra.mxu0 0.0
    %119 = vmatprep.subr.mxu0 0.0
    %120 = vmatpush1.msra.mxu0 0.0
    %121 = vmatprep.subr.mxu0 0.0
    %122 = vmatpush1.msra.mxu0 0.0
    %123 = vmatprep.subr.mxu0 0.0
    %124 = vmatpush1.msra.mxu0 0.0
    %125 = vmatprep.subr.mxu0 0.0
    %126 = vmatpush1.msra.mxu0 0.0
    %127 = vmatprep.subr.mxu0 0.0
    %128 = vmatpush1.msra.mxu0 0.0
    %129 = vmatprep.subr.mxu0 0.0
    %130 = vmatpush1.msra.mxu0 0.0
    %131 = vmatprep.subr.mxu0 0.0
    %132 = vmatpush1.msra.mxu0 0.0
    %133 = vmatprep.subr.mxu0 0.0
    %134 = vmatpush1.msra.mxu0 0.0
    %135 = vmatprep.subr.mxu0 0.0
    %136 = vmatpush1.msra.mxu0 0.0
    %137 = vmatprep.subr.mxu0 0.0
    %138 = vmatpush1.msra.mxu0 0.0
    %139 = vmatprep.subr.mxu0 0.0
    %140 = vmatpush1.msra.mxu0 0.0
    %141 = vmatprep.subr.mxu0 0.0
    %142 = vmatpush1.msra.mxu0 0.0
    %143 = vmatprep.subr.mxu0 0.0
    %144 = vmatpush1.msra.mxu0 0.0
    %145 = vmatprep.subr.mxu0 0.0
    %146 = vmatpush1.msra.mxu0 0.0
    %147 = vmatprep.subr.mxu0 0.0
    %148 = vmatpush1.msra.mxu0 0.0
    %149 = vmatprep.subr.mxu0 0.0
    %150 = vmatpush1.msra.mxu0 0.0
    %151 = vmatprep.mubr.f32.mxu0 0.0
    %152 = vmatmul.mubr.f32.gmra.mrb[0].mxu0 %v77
    %v153 = vpop.f32.mrb[0].mxu0
    %v154 = vadd.f32 %v66, %v153
    %v155 = vpop.f32.mrb[0].mxu0
    %v156 = vadd.f32 %v70, %v155
    %157 = vmatprep.mubr.f32.mxu0 0.0
    %158 = vmatmul.mubr.f32.gmra.mrb[0].mxu0 %v80
    %v159 = vpop.f32.mrb[0].mxu0
    %v160 = vadd.f32 %v66, %v159
    %v161 = vpop.f32.mrb[0].mxu0
    %v162 = vadd.f32 %v70, %v161
    %163 = vdwg.mxu0
    %vm164 = vcmask 523264
    %v166 = vsel %vm164, 0.0, 0
    %168 = vmatprep.subr.mxu0 %v42
    %169 = vmatpush1.msra.mxu0 %v41
    %170 = vmatprep.subr.mxu0 %v44
    %171 = vmatpush1.msra.mxu0 %v43
    %172 = vmatprep.subr.mxu0 %v46
    %173 = vmatpush1.msra.mxu0 %v45
    %174 = vmatprep.subr.mxu0 %v48
    %175 = vmatpush1.msra.mxu0 %v47
    %176 = vmatprep.subr.mxu0 %v50
    %177 = vmatpush1.msra.mxu0 %v49
    %178 = vmatprep.subr.mxu0 %v52
    %179 = vmatpush1.msra.mxu0 %v51
    %180 = vmatprep.subr.mxu0 %v54
    %181 = vmatpush1.msra.mxu0 %v53
    %182 = vmatprep.subr.mxu0 %v56
    %183 = vmatpush1.msra.mxu0 %v55
    %184 = vmatprep.subr.mxu0 0.0
    %185 = vmatpush1.msra.mxu0 0.0
    %186 = vmatprep.subr.mxu0 0.0
    %187 = vmatpush1.msra.mxu0 0.0
    %188 = vmatprep.subr.mxu0 0.0
    %189 = vmatpush1.msra.mxu0 0.0
    %190 = vmatprep.subr.mxu0 0.0
    %191 = vmatpush1.msra.mxu0 0.0
    %192 = vmatprep.subr.mxu0 0.0
    %193 = vmatpush1.msra.mxu0 0.0
    %194 = vmatprep.subr.mxu0 0.0
    %195 = vmatpush1.msra.mxu0 0.0
    %196 = vmatprep.subr.mxu0 0.0
    %197 = vmatpush1.msra.mxu0 0.0
    %198 = vmatprep.subr.mxu0 0.0
    %199 = vmatpush1.msra.mxu0 0.0
    %200 = vmatprep.subr.mxu0 0.0
    %201 = vmatpush1.msra.mxu0 0.0
    %202 = vmatprep.subr.mxu0 0.0
    %203 = vmatpush1.msra.mxu0 0.0
    %204 = vmatprep.subr.mxu0 0.0
    %205 = vmatpush1.msra.mxu0 0.0
    %206 = vmatprep.subr.mxu0 0.0
    %207 = vmatpush1.msra.mxu0 0.0
    %208 = vmatprep.subr.mxu0 0.0
    %209 = vmatpush1.msra.mxu0 0.0
    %210 = vmatprep.subr.mxu0 0.0
    %211 = vmatpush1.msra.mxu0 0.0
    %212 = vmatprep.subr.mxu0 0.0
    %213 = vmatpush1.msra.mxu0 0.0
    %214 = vmatprep.subr.mxu0 0.0
    %215 = vmatpush1.msra.mxu0 0.0
    %216 = vmatprep.subr.mxu0 0.0
    %217 = vmatpush1.msra.mxu0 0.0
    %218 = vmatprep.subr.mxu0 0.0
    %219 = vmatpush1.msra.mxu0 0.0
    %220 = vmatprep.subr.mxu0 0.0
    %221 = vmatpush1.msra.mxu0 0.0
    %222 = vmatprep.subr.mxu0 0.0
    %223 = vmatpush1.msra.mxu0 0.0
    %224 = vmatprep.subr.mxu0 0.0
    %225 = vmatpush1.msra.mxu0 0.0
    %226 = vmatprep.subr.mxu0 0.0
    %227 = vmatpush1.msra.mxu0 0.0
    %228 = vmatprep.subr.mxu0 0.0
    %229 = vmatpush1.msra.mxu0 0.0
    %230 = vmatprep.subr.mxu0 0.0
    %231 = vmatpush1.msra.mxu0 0.0
    %232 = vmatprep.mubr.f32.mxu0 0.0
    %233 = vmatmul.mubr.f32.gmra.mrb[0].mxu0 %v166
    %v234 = vpop.f32.mrb[0].mxu0
    %v235 = vadd.f32 0.0, %v234
    %v236 = vpop.f32.mrb[0].mxu0
    %v237 = vadd.f32 0.0, %v236
    %238 = vdwg.mxu0
    %v239 = vadd.f32 %v154, %v235
    %v240 = vxor.u32 %v239, 2147483648
    %v241 = vmul.f32 %v240, 1.442695
    %v242 = vpow.pop %v241
    %v243 = vadd.f32 %v242, 1.0
    %v244 = vrcp.pop %v243
    %v245 = vmul.f32 1.0, %v244
    %v247 = vlaneseq
    %v248 = vshrl.u32 %v247, 7
    %v249 = vsub.s32 0, %v248
    %v250 = vrot.slane %v57, %v249
    %v252 = vadd.f32 %v237, %v250
    %v253 = vmul.f32 %v245, %v252
    %v254 = vadd.f32 %v156, %v253
    %v255 = vtanh.pop %v254
    %v256 = vsub.f32 1.0, %v245
    %258 = vrot.lane.b32.xlu0 %v255, 64
    %v259 = vpop.permute.xlu0 %258
    %v261 = vmul.f32 %v256, %v259
    %v262 = vmul.f32 %v245, 0.0
    %v263 = vadd.f32 %v261, %v262
    %265 = vrot.lane.b32.xlu0 %v263, 64
    %v266 = vpop.permute.xlu0 %265
    %v267 = vsel %vm164, %v266, 0
    %269 = vmatprep.subr.mxu0 %v42
    %270 = vmatpush1.msra.mxu0 %v41
    %271 = vmatprep.subr.mxu0 %v44
    %272 = vmatpush1.msra.mxu0 %v43
    %273 = vmatprep.subr.mxu0 %v46
    %274 = vmatpush1.msra.mxu0 %v45
    %275 = vmatprep.subr.mxu0 %v48
    %276 = vmatpush1.msra.mxu0 %v47
    %277 = vmatprep.subr.mxu0 %v50
    %278 = vmatpush1.msra.mxu0 %v49
    %279 = vmatprep.subr.mxu0 %v52
    %280 = vmatpush1.msra.mxu0 %v51
    %281 = vmatprep.subr.mxu0 %v54
    %282 = vmatpush1.msra.mxu0 %v53
    %283 = vmatprep.subr.mxu0 %v56
    %284 = vmatpush1.msra.mxu0 %v55
    %285 = vmatprep.subr.mxu0 0.0
    %286 = vmatpush1.msra.mxu0 0.0
    %287 = vmatprep.subr.mxu0 0.0
    %288 = vmatpush1.msra.mxu0 0.0
    %289 = vmatprep.subr.mxu0 0.0
    %290 = vmatpush1.msra.mxu0 0.0
    %291 = vmatprep.subr.mxu0 0.0
    %292 = vmatpush1.msra.mxu0 0.0
    %293 = vmatprep.subr.mxu0 0.0
    %294 = vmatpush1.msra.mxu0 0.0
    %295 = vmatprep.subr.mxu0 0.0
    %296 = vmatpush1.msra.mxu0 0.0
    %297 = vmatprep.subr.mxu0 0.0
    %298 = vmatpush1.msra.mxu0 0.0
    %299 = vmatprep.subr.mxu0 0.0
    %300 = vmatpush1.msra.mxu0 0.0
    %301 = vmatprep.subr.mxu0 0.0
    %302 = vmatpush1.msra.mxu0 0.0
    %303 = vmatprep.subr.mxu0 0.0
    %304 = vmatpush1.msra.mxu0 0.0
    %305 = vmatprep.subr.mxu0 0.0
    %306 = vmatpush1.msra.mxu0 0.0
    %307 = vmatprep.subr.mxu0 0.0
    %308 = vmatpush1.msra.mxu0 0.0
    %309 = vmatprep.subr.mxu0 0.0
    %310 = vmatpush1.msra.mxu0 0.0
    %311 = vmatprep.subr.mxu0 0.0
    %312 = vmatpush1.msra.mxu0 0.0
    %313 = vmatprep.subr.mxu0 0.0
    %314 = vmatpush1.msra.mxu0 0.0
    %315 = vmatprep.subr.mxu0 0.0
    %316 = vmatpush1.msra.mxu0 0.0
    %317 = vmatprep.subr.mxu0 0.0
    %318 = vmatpush1.msra.mxu0 0.0
    %319 = vmatprep.subr.mxu0 0.0
    %320 = vmatpush1.msra.mxu0 0.0
    %321 = vmatprep.subr.mxu0 0.0
    %322 = vmatpush1.msra.mxu0 0.0
    %323 = vmatprep.subr.mxu0 0.0
    %324 = vmatpush1.msra.mxu0 0.0
    %325 = vmatprep.subr.mxu0 0.0
    %326 = vmatpush1.msra.mxu0 0.0
    %327 = vmatprep.subr.mxu0 0.0
    %328 = vmatpush1.msra.mxu0 0.0
    %329 = vmatprep.subr.mxu0 0.0
    %330 = vmatpush1.msra.mxu0 0.0
    %331 = vmatprep.subr.mxu0 0.0
    %332 = vmatpush1.msra.mxu0 0.0
    %333 = vmatprep.mubr.f32.mxu0 0.0
    %334 = vmatmul.mubr.f32.gmra.mrb[0].mxu0 %v267
    %v335 = vpop.f32.mrb[0].mxu0
    %v336 = vadd.f32 0.0, %v335
    %v337 = vpop.f32.mrb[0].mxu0
    %v338 = vadd.f32 0.0, %v337
    %339 = vdwg.mxu0
    %v341 = vrot.slane %v336, 6
    %v343 = vadd.f32 %v154, %v341
    %v344 = vxor.u32 %v343, 2147483648
    %v345 = vmul.f32 %v344, 1.442695
    %v346 = vpow.pop %v345
    %v347 = vadd.f32 %v346, 1.0
    %v348 = vrcp.pop %v347
    %v349 = vmul.f32 1.0, %v348
    %v350 = vadd.f32 %v338, %v250
    %v352 = vrot.slane %v350, 6
    %v354 = vmul.f32 %v349, %v352
    %v355 = vadd.f32 %v156, %v354
    %v356 = vtanh.pop %v355
    %v357 = vsub.f32 1.0, %v349
    %359 = vrot.lane.b32.xlu0 %v356, 64
    %v360 = vpop.permute.xlu0 %359
    %v362 = vmul.f32 %v357, %v360
    %v363 = vrot.slane %v263, 6
    %v365 = vmul.f32 %v349, %v363
    %v366 = vadd.f32 %v362, %v365
    %v368 = vrot.slane %v366, 2
    %369 = vrot.lane.b32.xlu0 %v368, 64
    %v370 = vpop.permute.xlu0 %369
    %v371 = vsel %vm164, %v370, 0
    %373 = vmatprep.subr.mxu0 %v42
    %374 = vmatpush1.msra.mxu0 %v41
    %375 = vmatprep.subr.mxu0 %v44
    %376 = vmatpush1.msra.mxu0 %v43
    %377 = vmatprep.subr.mxu0 %v46
    %378 = vmatpush1.msra.mxu0 %v45
    %379 = vmatprep.subr.mxu0 %v48
    %380 = vmatpush1.msra.mxu0 %v47
    %381 = vmatprep.subr.mxu0 %v50
    %382 = vmatpush1.msra.mxu0 %v49
    %383 = vmatprep.subr.mxu0 %v52
    %384 = vmatpush1.msra.mxu0 %v51
    %385 = vmatprep.subr.mxu0 %v54
    %386 = vmatpush1.msra.mxu0 %v53
    %387 = vmatprep.subr.mxu0 %v56
    %388 = vmatpush1.msra.mxu0 %v55
    %389 = vmatprep.subr.mxu0 0.0
    %390 = vmatpush1.msra.mxu0 0.0
    %391 = vmatprep.subr.mxu0 0.0
    %392 = vmatpush1.msra.mxu0 0.0
    %393 = vmatprep.subr.mxu0 0.0
    %394 = vmatpush1.msra.mxu0 0.0
    %395 = vmatprep.subr.mxu0 0.0
    %396 = vmatpush1.msra.mxu0 0.0
    %397 = vmatprep.subr.mxu0 0.0
    %398 = vmatpush1.msra.mxu0 0.0
    %399 = vmatprep.subr.mxu0 0.0
    %400 = vmatpush1.msra.mxu0 0.0
    %401 = vmatprep.subr.mxu0 0.0
    %402 = vmatpush1.msra.mxu0 0.0
    %403 = vmatprep.subr.mxu0 0.0
    %404 = vmatpush1.msra.mxu0 0.0
    %405 = vmatprep.subr.mxu0 0.0
    %406 = vmatpush1.msra.mxu0 0.0
    %407 = vmatprep.subr.mxu0 0.0
    %408 = vmatpush1.msra.mxu0 0.0
    %409 = vmatprep.subr.mxu0 0.0
    %410 = vmatpush1.msra.mxu0 0.0
    %411 = vmatprep.subr.mxu0 0.0
    %412 = vmatpush1.msra.mxu0 0.0
    %413 = vmatprep.subr.mxu0 0.0
    %414 = vmatpush1.msra.mxu0 0.0
    %415 = vmatprep.subr.mxu0 0.0
    %416 = vmatpush1.msra.mxu0 0.0
    %417 = vmatprep.subr.mxu0 0.0
    %418 = vmatpush1.msra.mxu0 0.0
    %419 = vmatprep.subr.mxu0 0.0
    %420 = vmatpush1.msra.mxu0 0.0
    %421 = vmatprep.subr.mxu0 0.0
    %422 = vmatpush1.msra.mxu0 0.0
    %423 = vmatprep.subr.mxu0 0.0
    %424 = vmatpush1.msra.mxu0 0.0
    %425 = vmatprep.subr.mxu0 0.0
    %426 = vmatpush1.msra.mxu0 0.0
    %427 = vmatprep.subr.mxu0 0.0
    %428 = vmatpush1.msra.mxu0 0.0
    %429 = vmatprep.subr.mxu0 0.0
    %430 = vmatpush1.msra.mxu0 0.0
    %431 = vmatprep.subr.mxu0 0.0
    %432 = vmatpush1.msra.mxu0 0.0
    %433 = vmatprep.subr.mxu0 0.0
    %434 = vmatpush1.msra.mxu0 0.0
    %435 = vmatprep.subr.mxu0 0.0
    %436 = vmatpush1.msra.mxu0 0.0
    %437 = vmatprep.mubr.f32.mxu0 0.0
    %438 = vmatmul.mubr.f32.gmra.mrb[0].mxu0 %v371
    %v439 = vpop.f32.mrb[0].mxu0
    %v440 = vadd.f32 0.0, %v439
    %v441 = vpop.f32.mrb[0].mxu0
    %v442 = vadd.f32 0.0, %v441
    %443 = vdwg.mxu0
    %v445 = vrot.slane %v440, 4
    %v447 = vadd.f32 %v154, %v445
    %v448 = vxor.u32 %v447, 2147483648
    %v449 = vmul.f32 %v448, 1.442695
    %v450 = vpow.pop %v449
    %v451 = vadd.f32 %v450, 1.0
    %v452 = vrcp.pop %v451
    %v453 = vmul.f32 1.0, %v452
    %v454 = vadd.f32 %v442, %v250
    %v456 = vrot.slane %v454, 4
    %v458 = vmul.f32 %v453, %v456
    %v459 = vadd.f32 %v156, %v458
    %v460 = vtanh.pop %v459
    %v461 = vsub.f32 1.0, %v453
    %463 = vrot.lane.b32.xlu0 %v460, 64
    %v464 = vpop.permute.xlu0 %463
    %v466 = vmul.f32 %v461, %v464
    %v467 = vrot.slane %v366, 6
    %v469 = vmul.f32 %v453, %v467
    %v470 = vadd.f32 %v466, %v469
    %v472 = vrot.slane %v470, 4
    %473 = vrot.lane.b32.xlu0 %v472, 64
    %v474 = vpop.permute.xlu0 %473
    %v475 = vsel %vm164, %v474, 0
    %477 = vmatprep.subr.mxu0 %v42
    %478 = vmatpush1.msra.mxu0 %v41
    %479 = vmatprep.subr.mxu0 %v44
    %480 = vmatpush1.msra.mxu0 %v43
    %481 = vmatprep.subr.mxu0 %v46
    %482 = vmatpush1.msra.mxu0 %v45
    %483 = vmatprep.subr.mxu0 %v48
    %484 = vmatpush1.msra.mxu0 %v47
    %485 = vmatprep.subr.mxu0 %v50
    %486 = vmatpush1.msra.mxu0 %v49
    %487 = vmatprep.subr.mxu0 %v52
    %488 = vmatpush1.msra.mxu0 %v51
    %489 = vmatprep.subr.mxu0 %v54
    %490 = vmatpush1.msra.mxu0 %v53
    %491 = vmatprep.subr.mxu0 %v56
    %492 = vmatpush1.msra.mxu0 %v55
    %493 = vmatprep.subr.mxu0 0.0
    %494 = vmatpush1.msra.mxu0 0.0
    %495 = vmatprep.subr.mxu0 0.0
    %496 = vmatpush1.msra.mxu0 0.0
    %497 = vmatprep.subr.mxu0 0.0
    %498 = vmatpush1.msra.mxu0 0.0
    %499 = vmatprep.subr.mxu0 0.0
    %500 = vmatpush1.msra.mxu0 0.0
    %501 = vmatprep.subr.mxu0 0.0
    %502 = vmatpush1.msra.mxu0 0.0
    %503 = vmatprep.subr.mxu0 0.0
    %504 = vmatpush1.msra.mxu0 0.0
    %505 = vmatprep.subr.mxu0 0.0
    %506 = vmatpush1.msra.mxu0 0.0
    %507 = vmatprep.subr.mxu0 0.0
    %508 = vmatpush1.msra.mxu0 0.0
    %509 = vmatprep.subr.mxu0 0.0
    %510 = vmatpush1.msra.mxu0 0.0
    %511 = vmatprep.subr.mxu0 0.0
    %512 = vmatpush1.msra.mxu0 0.0
    %513 = vmatprep.subr.mxu0 0.0
    %514 = vmatpush1.msra.mxu0 0.0
    %515 = vmatprep.subr.mxu0 0.0
    %516 = vmatpush1.msra.mxu0 0.0
    %517 = vmatprep.subr.mxu0 0.0
    %518 = vmatpush1.msra.mxu0 0.0
    %519 = vmatprep.subr.mxu0 0.0
    %520 = vmatpush1.msra.mxu0 0.0
    %521 = vmatprep.subr.mxu0 0.0
    %522 = vmatpush1.msra.mxu0 0.0
    %523 = vmatprep.subr.mxu0 0.0
    %524 = vmatpush1.msra.mxu0 0.0
    %525 = vmatprep.subr.mxu0 0.0
    %526 = vmatpush1.msra.mxu0 0.0
    %527 = vmatprep.subr.mxu0 0.0
    %528 = vmatpush1.msra.mxu0 0.0
    %529 = vmatprep.subr.mxu0 0.0
    %530 = vmatpush1.msra.mxu0 0.0
    %531 = vmatprep.subr.mxu0 0.0
    %532 = vmatpush1.msra.mxu0 0.0
    %533 = vmatprep.subr.mxu0 0.0
    %534 = vmatpush1.msra.mxu0 0.0
    %535 = vmatprep.subr.mxu0 0.0
    %536 = vmatpush1.msra.mxu0 0.0
    %537 = vmatprep.subr.mxu0 0.0
    %538 = vmatpush1.msra.mxu0 0.0
    %539 = vmatprep.subr.mxu0 0.0
    %540 = vmatpush1.msra.mxu0 0.0
    %541 = vmatprep.mubr.f32.mxu0 0.0
    %542 = vmatmul.mubr.f32.gmra.mrb[0].mxu0 %v475
    %v543 = vpop.f32.mrb[0].mxu0
    %v544 = vadd.f32 0.0, %v543
    %v545 = vpop.f32.mrb[0].mxu0
    %v546 = vadd.f32 0.0, %v545
    %547 = vdwg.mxu0
    %v549 = vrot.slane %v544, 2
    %v551 = vadd.f32 %v154, %v549
    %v552 = vxor.u32 %v551, 2147483648
    %v553 = vmul.f32 %v552, 1.442695
    %v554 = vpow.pop %v553
    %v555 = vadd.f32 %v554, 1.0
    %v556 = vrcp.pop %v555
    %v557 = vmul.f32 1.0, %v556
    %v558 = vadd.f32 %v546, %v250
    %v560 = vrot.slane %v558, 2
    %v562 = vmul.f32 %v557, %v560
    %v563 = vadd.f32 %v156, %v562
    %v564 = vtanh.pop %v563
    %v565 = vsub.f32 1.0, %v557
    %567 = vrot.lane.b32.xlu0 %v564, 64
    %v568 = vpop.permute.xlu0 %567
    %v570 = vmul.f32 %v565, %v568
    %v571 = vrot.slane %v470, 6
    %v573 = vmul.f32 %v557, %v571
    %v574 = vadd.f32 %v570, %v573
    %v576 = vrot.slane %v574, 6
    %577 = vrot.lane.b32.xlu0 %v576, 64
    %v578 = vpop.permute.xlu0 %577
    %v579 = vsel %vm164, %v578, 0
    %581 = vmatprep.subr.mxu0 %v42
    %582 = vmatpush1.msra.mxu0 %v41
    %583 = vmatprep.subr.mxu0 %v44
    %584 = vmatpush1.msra.mxu0 %v43
    %585 = vmatprep.subr.mxu0 %v46
    %586 = vmatpush1.msra.mxu0 %v45
    %587 = vmatprep.subr.mxu0 %v48
    %588 = vmatpush1.msra.mxu0 %v47
    %589 = vmatprep.subr.mxu0 %v50
    %590 = vmatpush1.msra.mxu0 %v49
    %591 = vmatprep.subr.mxu0 %v52
    %592 = vmatpush1.msra.mxu0 %v51
    %593 = vmatprep.subr.mxu0 %v54
    %594 = vmatpush1.msra.mxu0 %v53
    %595 = vmatprep.subr.mxu0 %v56
    %596 = vmatpush1.msra.mxu0 %v55
    %597 = vmatprep.subr.mxu0 0.0
    %598 = vmatpush1.msra.mxu0 0.0
    %599 = vmatprep.subr.mxu0 0.0
    %600 = vmatpush1.msra.mxu0 0.0
    %601 = vmatprep.subr.mxu0 0.0
    %602 = vmatpush1.msra.mxu0 0.0
    %603 = vmatprep.subr.mxu0 0.0
    %604 = vmatpush1.msra.mxu0 0.0
    %605 = vmatprep.subr.mxu0 0.0
    %606 = vmatpush1.msra.mxu0 0.0
    %607 = vmatprep.subr.mxu0 0.0
    %608 = vmatpush1.msra.mxu0 0.0
    %609 = vmatprep.subr.mxu0 0.0
    %610 = vmatpush1.msra.mxu0 0.0
    %611 = vmatprep.subr.mxu0 0.0
    %612 = vmatpush1.msra.mxu0 0.0
    %613 = vmatprep.subr.mxu0 0.0
    %614 = vmatpush1.msra.mxu0 0.0
    %615 = vmatprep.subr.mxu0 0.0
    %616 = vmatpush1.msra.mxu0 0.0
    %617 = vmatprep.subr.mxu0 0.0
    %618 = vmatpush1.msra.mxu0 0.0
    %619 = vmatprep.subr.mxu0 0.0
    %620 = vmatpush1.msra.mxu0 0.0
    %621 = vmatprep.subr.mxu0 0.0
    %622 = vmatpush1.msra.mxu0 0.0
    %623 = vmatprep.subr.mxu0 0.0
    %624 = vmatpush1.msra.mxu0 0.0
    %625 = vmatprep.subr.mxu0 0.0
    %626 = vmatpush1.msra.mxu0 0.0
    %627 = vmatprep.subr.mxu0 0.0
    %628 = vmatpush1.msra.mxu0 0.0
    %629 = vmatprep.subr.mxu0 0.0
    %630 = vmatpush1.msra.mxu0 0.0
    %631 = vmatprep.subr.mxu0 0.0
    %632 = vmatpush1.msra.mxu0 0.0
    %633 = vmatprep.subr.mxu0 0.0
    %634 = vmatpush1.msra.mxu0 0.0
    %635 = vmatprep.subr.mxu0 0.0
    %636 = vmatpush1.msra.mxu0 0.0
    %637 = vmatprep.subr.mxu0 0.0
    %638 = vmatpush1.msra.mxu0 0.0
    %639 = vmatprep.subr.mxu0 0.0
    %640 = vmatpush1.msra.mxu0 0.0
    %641 = vmatprep.subr.mxu0 0.0
    %642 = vmatpush1.msra.mxu0 0.0
    %643 = vmatprep.subr.mxu0 0.0
    %644 = vmatpush1.msra.mxu0 0.0
    %645 = vmatprep.mubr.f32.mxu0 0.0
    %646 = vmatmul.mubr.f32.gmra.mrb[0].mxu0 %v579
    %v647 = vpop.f32.mrb[0].mxu0
    %v648 = vadd.f32 0.0, %v647
    %v649 = vpop.f32.mrb[0].mxu0
    %v650 = vadd.f32 0.0, %v649
    %651 = vdwg.mxu0
    %v652 = vadd.f32 %v160, %v648
    %v653 = vxor.u32 %v652, 2147483648
    %v654 = vmul.f32 %v653, 1.442695
    %v655 = vpow.pop %v654
    %v656 = vadd.f32 %v655, 1.0
    %v657 = vrcp.pop %v656
    %v658 = vmul.f32 1.0, %v657
    %v659 = vadd.f32 %v650, %v250
    %v660 = vmul.f32 %v658, %v659
    %v661 = vadd.f32 %v162, %v660
    %v662 = vtanh.pop %v661
    %v663 = vsub.f32 1.0, %v658
    %665 = vrot.lane.b32.xlu0 %v662, 64
    %v666 = vpop.permute.xlu0 %665
    %v668 = vmul.f32 %v663, %v666
    %v670 = vmul.f32 %v658, %v576
    %v671 = vadd.f32 %v668, %v670
    %673 = vrot.lane.b32.xlu0 %v671, 64
    %v674 = vpop.permute.xlu0 %673
    %v675 = vsel %vm164, %v674, 0
    %677 = vmatprep.subr.mxu0 %v42
    %678 = vmatpush1.msra.mxu0 %v41
    %679 = vmatprep.subr.mxu0 %v44
    %680 = vmatpush1.msra.mxu0 %v43
    %681 = vmatprep.subr.mxu0 %v46
    %682 = vmatpush1.msra.mxu0 %v45
    %683 = vmatprep.subr.mxu0 %v48
    %684 = vmatpush1.msra.mxu0 %v47
    %685 = vmatprep.subr.mxu0 %v50
    %686 = vmatpush1.msra.mxu0 %v49
    %687 = vmatprep.subr.mxu0 %v52
    %688 = vmatpush1.msra.mxu0 %v51
    %689 = vmatprep.subr.mxu0 %v54
    %690 = vmatpush1.msra.mxu0 %v53
    %691 = vmatprep.subr.mxu0 %v56
    %692 = vmatpush1.msra.mxu0 %v55
    %693 = vmatprep.subr.mxu0 0.0
    %694 = vmatpush1.msra.mxu0 0.0
    %695 = vmatprep.subr.mxu0 0.0
    %696 = vmatpush1.msra.mxu0 0.0
    %697 = vmatprep.subr.mxu0 0.0
    %698 = vmatpush1.msra.mxu0 0.0
    %699 = vmatprep.subr.mxu0 0.0
    %700 = vmatpush1.msra.mxu0 0.0
    %701 = vmatprep.subr.mxu0 0.0
    %702 = vmatpush1.msra.mxu0 0.0
    %703 = vmatprep.subr.mxu0 0.0
    %704 = vmatpush1.msra.mxu0 0.0
    %705 = vmatprep.subr.mxu0 0.0
    %706 = vmatpush1.msra.mxu0 0.0
    %707 = vmatprep.subr.mxu0 0.0
    %708 = vmatpush1.msra.mxu0 0.0
    %709 = vmatprep.subr.mxu0 0.0
    %710 = vmatpush1.msra.mxu0 0.0
    %711 = vmatprep.subr.mxu0 0.0
    %712 = vmatpush1.msra.mxu0 0.0
    %713 = vmatprep.subr.mxu0 0.0
    %714 = vmatpush1.msra.mxu0 0.0
    %715 = vmatprep.subr.mxu0 0.0
    %716 = vmatpush1.msra.mxu0 0.0
    %717 = vmatprep.subr.mxu0 0.0
    %718 = vmatpush1.msra.mxu0 0.0
    %719 = vmatprep.subr.mxu0 0.0
    %720 = vmatpush1.msra.mxu0 0.0
    %721 = vmatprep.subr.mxu0 0.0
    %722 = vmatpush1.msra.mxu0 0.0
    %723 = vmatprep.subr.mxu0 0.0
    %724 = vmatpush1.msra.mxu0 0.0
    %725 = vmatprep.subr.mxu0 0.0
    %726 = vmatpush1.msra.mxu0 0.0
    %727 = vmatprep.subr.mxu0 0.0
    %728 = vmatpush1.msra.mxu0 0.0
    %729 = vmatprep.subr.mxu0 0.0
    %730 = vmatpush1.msra.mxu0 0.0
    %731 = vmatprep.subr.mxu0 0.0
    %732 = vmatpush1.msra.mxu0 0.0
    %733 = vmatprep.subr.mxu0 0.0
    %734 = vmatpush1.msra.mxu0 0.0
    %735 = vmatprep.subr.mxu0 0.0
    %736 = vmatpush1.msra.mxu0 0.0
    %737 = vmatprep.subr.mxu0 0.0
    %738 = vmatpush1.msra.mxu0 0.0
    %739 = vmatprep.subr.mxu0 0.0
    %740 = vmatpush1.msra.mxu0 0.0
    %741 = vmatprep.mubr.f32.mxu0 0.0
    %742 = vmatmul.mubr.f32.gmra.mrb[0].mxu0 %v675
    %v743 = vpop.f32.mrb[0].mxu0
    %v744 = vadd.f32 0.0, %v743
    %v745 = vpop.f32.mrb[0].mxu0
    %v746 = vadd.f32 0.0, %v745
    %747 = vdwg.mxu0
    %v749 = vrot.slane %v744, 6
    %v751 = vadd.f32 %v160, %v749
    %v752 = vxor.u32 %v751, 2147483648
    %v753 = vmul.f32 %v752, 1.442695
    %v754 = vpow.pop %v753
    %v755 = vadd.f32 %v754, 1.0
    %v756 = vrcp.pop %v755
    %v757 = vmul.f32 1.0, %v756
    %v758 = vadd.f32 %v746, %v250
    %v760 = vrot.slane %v758, 6
    %v762 = vmul.f32 %v757, %v760
    %v763 = vadd.f32 %v162, %v762
    %v764 = vtanh.pop %v763
    %v765 = vsub.f32 1.0, %v757
    %767 = vrot.lane.b32.xlu0 %v764, 64
    %v768 = vpop.permute.xlu0 %767
    %v770 = vmul.f32 %v765, %v768
    %v771 = vrot.slane %v671, 6
    %v773 = vmul.f32 %v757, %v771
    %v774 = vadd.f32 %v770, %v773
    %v776 = vrot.slane %v774, 2
    %777 = vrot.lane.b32.xlu0 %v776, 64
    %v778 = vpop.permute.xlu0 %777
    %v779 = vsel %vm164, %v778, 0
    %781 = vmatprep.subr.mxu0 %v42
    %782 = vmatpush1.msra.mxu0 %v41
    %783 = vmatprep.subr.mxu0 %v44
    %784 = vmatpush1.msra.mxu0 %v43
    %785 = vmatprep.subr.mxu0 %v46
    %786 = vmatpush1.msra.mxu0 %v45
    %787 = vmatprep.subr.mxu0 %v48
    %788 = vmatpush1.msra.mxu0 %v47
    %789 = vmatprep.subr.mxu0 %v50
    %790 = vmatpush1.msra.mxu0 %v49
    %791 = vmatprep.subr.mxu0 %v52
    %792 = vmatpush1.msra.mxu0 %v51
    %793 = vmatprep.subr.mxu0 %v54
    %794 = vmatpush1.msra.mxu0 %v53
    %795 = vmatprep.subr.mxu0 %v56
    %796 = vmatpush1.msra.mxu0 %v55
    %797 = vmatprep.subr.mxu0 0.0
    %798 = vmatpush1.msra.mxu0 0.0
    %799 = vmatprep.subr.mxu0 0.0
    %800 = vmatpush1.msra.mxu0 0.0
    %801 = vmatprep.subr.mxu0 0.0
    %802 = vmatpush1.msra.mxu0 0.0
    %803 = vmatprep.subr.mxu0 0.0
    %804 = vmatpush1.msra.mxu0 0.0
    %805 = vmatprep.subr.mxu0 0.0
    %806 = vmatpush1.msra.mxu0 0.0
    %807 = vmatprep.subr.mxu0 0.0
    %808 = vmatpush1.msra.mxu0 0.0
    %809 = vmatprep.subr.mxu0 0.0
    %810 = vmatpush1.msra.mxu0 0.0
    %811 = vmatprep.subr.mxu0 0.0
    %812 = vmatpush1.msra.mxu0 0.0
    %813 = vmatprep.subr.mxu0 0.0
    %814 = vmatpush1.msra.mxu0 0.0
    %815 = vmatprep.subr.mxu0 0.0
    %816 = vmatpush1.msra.mxu0 0.0
    %817 = vmatprep.subr.mxu0 0.0
    %818 = vmatpush1.msra.mxu0 0.0
    %819 = vmatprep.subr.mxu0 0.0
    %820 = vmatpush1.msra.mxu0 0.0
    %821 = vmatprep.subr.mxu0 0.0
    %822 = vmatpush1.msra.mxu0 0.0
    %823 = vmatprep.subr.mxu0 0.0
    %824 = vmatpush1.msra.mxu0 0.0
    %825 = vmatprep.subr.mxu0 0.0
    %826 = vmatpush1.msra.mxu0 0.0
    %827 = vmatprep.subr.mxu0 0.0
    %828 = vmatpush1.msra.mxu0 0.0
    %829 = vmatprep.subr.mxu0 0.0
    %830 = vmatpush1.msra.mxu0 0.0
    %831 = vmatprep.subr.mxu0 0.0
    %832 = vmatpush1.msra.mxu0 0.0
    %833 = vmatprep.subr.mxu0 0.0
    %834 = vmatpush1.msra.mxu0 0.0
    %835 = vmatprep.subr.mxu0 0.0
    %836 = vmatpush1.msra.mxu0 0.0
    %837 = vmatprep.subr.mxu0 0.0
    %838 = vmatpush1.msra.mxu0 0.0
    %839 = vmatprep.subr.mxu0 0.0
    %840 = vmatpush1.msra.mxu0 0.0
    %841 = vmatprep.subr.mxu0 0.0
    %842 = vmatpush1.msra.mxu0 0.0
    %843 = vmatprep.subr.mxu0 0.0
    %844 = vmatpush1.msra.mxu0 0.0
    %845 = vmatprep.mubr.f32.mxu0 0.0
    %846 = vmatmul.mubr.f32.gmra.mrb[0].mxu0 %v779
    %v847 = vpop.f32.mrb[0].mxu0
    %v848 = vadd.f32 0.0, %v847
    %v849 = vpop.f32.mrb[0].mxu0
    %v850 = vadd.f32 0.0, %v849
    %851 = vdwg.mxu0
    %v853 = vrot.slane %v848, 4
    %v855 = vadd.f32 %v160, %v853
    %v856 = vxor.u32 %v855, 2147483648
    %v857 = vmul.f32 %v856, 1.442695
    %v858 = vpow.pop %v857
    %v859 = vadd.f32 %v858, 1.0
    %v860 = vrcp.pop %v859
    %v861 = vmul.f32 1.0, %v860
    %v862 = vadd.f32 %v850, %v250
    %v864 = vrot.slane %v862, 4
    %v866 = vmul.f32 %v861, %v864
    %v867 = vadd.f32 %v162, %v866
    %v868 = vtanh.pop %v867
    %v869 = vsub.f32 1.0, %v861
    %871 = vrot.lane.b32.xlu0 %v868, 64
    %v872 = vpop.permute.xlu0 %871
    %v874 = vmul.f32 %v869, %v872
    %v875 = vrot.slane %v774, 6
    %v877 = vmul.f32 %v861, %v875
    %v878 = vadd.f32 %v874, %v877
    %v880 = vrot.slane %v878, 4
    %881 = vrot.lane.b32.xlu0 %v880, 64
    %v882 = vpop.permute.xlu0 %881
    %v883 = vsel %vm164, %v882, 0
    %885 = vmatprep.subr.mxu0 %v42
    %886 = vmatpush1.msra.mxu0 %v41
    %887 = vmatprep.subr.mxu0 %v44
    %888 = vmatpush1.msra.mxu0 %v43
    %889 = vmatprep.subr.mxu0 %v46
    %890 = vmatpush1.msra.mxu0 %v45
    %891 = vmatprep.subr.mxu0 %v48
    %892 = vmatpush1.msra.mxu0 %v47
    %893 = vmatprep.subr.mxu0 %v50
    %894 = vmatpush1.msra.mxu0 %v49
    %895 = vmatprep.subr.mxu0 %v52
    %896 = vmatpush1.msra.mxu0 %v51
    %897 = vmatprep.subr.mxu0 %v54
    %898 = vmatpush1.msra.mxu0 %v53
    %899 = vmatprep.subr.mxu0 %v56
    %900 = vmatpush1.msra.mxu0 %v55
    %901 = vmatprep.subr.mxu0 0.0
    %902 = vmatpush1.msra.mxu0 0.0
    %903 = vmatprep.subr.mxu0 0.0
    %904 = vmatpush1.msra.mxu0 0.0
    %905 = vmatprep.subr.mxu0 0.0
    %906 = vmatpush1.msra.mxu0 0.0
    %907 = vmatprep.subr.mxu0 0.0
    %908 = vmatpush1.msra.mxu0 0.0
    %909 = vmatprep.subr.mxu0 0.0
    %910 = vmatpush1.msra.mxu0 0.0
    %911 = vmatprep.subr.mxu0 0.0
    %912 = vmatpush1.msra.mxu0 0.0
    %913 = vmatprep.subr.mxu0 0.0
    %914 = vmatpush1.msra.mxu0 0.0
    %915 = vmatprep.subr.mxu0 0.0
    %916 = vmatpush1.msra.mxu0 0.0
    %917 = vmatprep.subr.mxu0 0.0
    %918 = vmatpush1.msra.mxu0 0.0
    %919 = vmatprep.subr.mxu0 0.0
    %920 = vmatpush1.msra.mxu0 0.0
    %921 = vmatprep.subr.mxu0 0.0
    %922 = vmatpush1.msra.mxu0 0.0
    %923 = vmatprep.subr.mxu0 0.0
    %924 = vmatpush1.msra.mxu0 0.0
    %925 = vmatprep.subr.mxu0 0.0
    %926 = vmatpush1.msra.mxu0 0.0
    %927 = vmatprep.subr.mxu0 0.0
    %928 = vmatpush1.msra.mxu0 0.0
    %929 = vmatprep.subr.mxu0 0.0
    %930 = vmatpush1.msra.mxu0 0.0
    %931 = vmatprep.subr.mxu0 0.0
    %932 = vmatpush1.msra.mxu0 0.0
    %933 = vmatprep.subr.mxu0 0.0
    %934 = vmatpush1.msra.mxu0 0.0
    %935 = vmatprep.subr.mxu0 0.0
    %936 = vmatpush1.msra.mxu0 0.0
    %937 = vmatprep.subr.mxu0 0.0
    %938 = vmatpush1.msra.mxu0 0.0
    %939 = vmatprep.subr.mxu0 0.0
    %940 = vmatpush1.msra.mxu0 0.0
    %941 = vmatprep.subr.mxu0 0.0
    %942 = vmatpush1.msra.mxu0 0.0
    %943 = vmatprep.subr.mxu0 0.0
    %944 = vmatpush1.msra.mxu0 0.0
    %945 = vmatprep.subr.mxu0 0.0
    %946 = vmatpush1.msra.mxu0 0.0
    %947 = vmatprep.subr.mxu0 0.0
    %948 = vmatpush1.msra.mxu0 0.0
    %949 = vmatprep.mubr.f32.mxu0 0.0
    %950 = vmatmul.mubr.f32.gmra.mrb[0].mxu0 %v883
    %v951 = vpop.f32.mrb[0].mxu0
    %v952 = vadd.f32 0.0, %v951
    %v953 = vpop.f32.mrb[0].mxu0
    %v954 = vadd.f32 0.0, %v953
    %955 = vdwg.mxu0
    %v957 = vrot.slane %v952, 2
    %v959 = vadd.f32 %v160, %v957
    %v960 = vxor.u32 %v959, 2147483648
    %v961 = vmul.f32 %v960, 1.442695
    %v962 = vpow.pop %v961
    %v963 = vadd.f32 %v962, 1.0
    %v964 = vrcp.pop %v963
    %v965 = vmul.f32 1.0, %v964
    %v966 = vadd.f32 %v954, %v250
    %v968 = vrot.slane %v966, 2
    %v970 = vmul.f32 %v965, %v968
    %v971 = vadd.f32 %v162, %v970
    %v972 = vtanh.pop %v971
    %v973 = vsub.f32 1.0, %v965
    %975 = vrot.lane.b32.xlu0 %v972, 64
    %v976 = vpop.permute.xlu0 %975
    %v978 = vmul.f32 %v973, %v976
    %v979 = vrot.slane %v878, 6
    %v981 = vmul.f32 %v965, %v979
    %v982 = vadd.f32 %v978, %v981
    %v983 = vld [vmem:[%s5] sm:$0xff]
    %v984 = vld [vmem:[%s5 + $0x8] sm:$0xff]
    %v985 = vld [vmem:[%s5 + $0x10] sm:$0xff]
    %v986 = vld [vmem:[%s5 + $0x18] sm:$0xff]
    %v987 = vld [vmem:[%s5 + $0x20] sm:$0xff]
    %v988 = vld [vmem:[%s5 + $0x28] sm:$0xff]
    %v989 = vld [vmem:[%s5 + $0x30] sm:$0xff]
    %v990 = vld [vmem:[%s5 + $0x38] sm:$0xff]
    %v991 = vld [vmem:[%s6] sm:$0x1]
    %v993 = vlaneseq
    %v994 = vshrl.u32 %v993, 7
    %v995 = vsub.s32 0, %v994
    %v996 = vrot.slane %v991, %v995
    %v999 = vrot.slane %v982, 6
    %1000 = vrot.lane.b32.xlu0 %v999, 64
    %v1001 = vpop.permute.xlu0 %1000
    %v1002 = vsel %vm164, %v1001, 0
    %1004 = vmatprep.subr.mxu0 0.0
    %1005 = vmatpush1.msra.mxu0 %v983
    %1006 = vmatprep.subr.mxu0 0.0
    %1007 = vmatpush1.msra.mxu0 %v984
    %1008 = vmatprep.subr.mxu0 0.0
    %1009 = vmatpush1.msra.mxu0 %v985
    %1010 = vmatprep.subr.mxu0 0.0
    %1011 = vmatpush1.msra.mxu0 %v986
    %1012 = vmatprep.subr.mxu0 0.0
    %1013 = vmatpush1.msra.mxu0 %v987
    %1014 = vmatprep.subr.mxu0 0.0
    %1015 = vmatpush1.msra.mxu0 %v988
    %1016 = vmatprep.subr.mxu0 0.0
    %1017 = vmatpush1.msra.mxu0 %v989
    %1018 = vmatprep.subr.mxu0 0.0
    %1019 = vmatpush1.msra.mxu0 %v990
    %1020 = vmatprep.subr.mxu0 0.0
    %1021 = vmatpush1.msra.mxu0 0.0
    %1022 = vmatprep.subr.mxu0 0.0
    %1023 = vmatpush1.msra.mxu0 0.0
    %1024 = vmatprep.subr.mxu0 0.0
    %1025 = vmatpush1.msra.mxu0 0.0
    %1026 = vmatprep.subr.mxu0 0.0
    %1027 = vmatpush1.msra.mxu0 0.0
    %1028 = vmatprep.subr.mxu0 0.0
    %1029 = vmatpush1.msra.mxu0 0.0
    %1030 = vmatprep.subr.mxu0 0.0
    %1031 = vmatpush1.msra.mxu0 0.0
    %1032 = vmatprep.subr.mxu0 0.0
    %1033 = vmatpush1.msra.mxu0 0.0
    %1034 = vmatprep.subr.mxu0 0.0
    %1035 = vmatpush1.msra.mxu0 0.0
    %1036 = vmatprep.subr.mxu0 0.0
    %1037 = vmatpush1.msra.mxu0 0.0
    %1038 = vmatprep.subr.mxu0 0.0
    %1039 = vmatpush1.msra.mxu0 0.0
    %1040 = vmatprep.subr.mxu0 0.0
    %1041 = vmatpush1.msra.mxu0 0.0
    %1042 = vmatprep.subr.mxu0 0.0
    %1043 = vmatpush1.msra.mxu0 0.0
    %1044 = vmatprep.subr.mxu0 0.0
    %1045 = vmatpush1.msra.mxu0 0.0
    %1046 = vmatprep.subr.mxu0 0.0
    %1047 = vmatpush1.msra.mxu0 0.0
    %1048 = vmatprep.subr.mxu0 0.0
    %1049 = vmatpush1.msra.mxu0 0.0
    %1050 = vmatprep.subr.mxu0 0.0
    %1051 = vmatpush1.msra.mxu0 0.0
    %1052 = vmatprep.subr.mxu0 0.0
    %1053 = vmatpush1.msra.mxu0 0.0
    %1054 = vmatprep.subr.mxu0 0.0
    %1055 = vmatpush1.msra.mxu0 0.0
    %1056 = vmatprep.subr.mxu0 0.0
    %1057 = vmatpush1.msra.mxu0 0.0
    %1058 = vmatprep.subr.mxu0 0.0
    %1059 = vmatpush1.msra.mxu0 0.0
    %1060 = vmatprep.subr.mxu0 0.0
    %1061 = vmatpush1.msra.mxu0 0.0
    %1062 = vmatprep.subr.mxu0 0.0
    %1063 = vmatpush1.msra.mxu0 0.0
    %1064 = vmatprep.subr.mxu0 0.0
    %1065 = vmatpush1.msra.mxu0 0.0
    %1066 = vmatprep.subr.mxu0 0.0
    %1067 = vmatpush1.msra.mxu0 0.0
    %1068 = vmatprep.mubr.f32.mxu0 0.0
    %1069 = vmatmul.mubr.f32.gmra.mrb[0].mxu0 %v1002
    %v1070 = vpop.f32.mrb[0].mxu0
    %v1071 = vadd.f32 %v996, %v1070
    %v1072 = vpop.f32.mrb[0].mxu0
    %1073 = vdwg.mxu0
    %vm1074 = vcmask 17408
    %1075 = vst.msk [vmem:[#allocation5] sm:$0x3] %vm1074, %v1071
    // Predicated region
    $region34: #{tpu_custom_call.1} parent=1 // pred_check
      _
    $region35: #{tpu_custom_call.1} parent=1 // pred_check_branch
      %1077 = sbr.rel (0) target = $region37
    $region36: #{tpu_custom_call.1} parent=1 // pred_region
      %s1079 = ssub.s32 32, 32
      %1080 = vsyncadd [#allocation4], %s1079
      %s1082 = sshll.u32 [#allocation5], 4
      %s1083 = int_to_ptr.vmem [resolvable:$true] %s1082
      %1085 = dma.vmem_to_hbm [thread:$0]  %s1083, 32, %s7, [#allocation4]
    $region37: #{tpu_custom_call.1} parent=1 // pred_fallthru
      _
    // Predicated region
    $region38: #{tpu_custom_call.1} parent=1 // pred_check
      _
    $region39: #{tpu_custom_call.1} parent=1 // pred_check_branch
      %1087 = sbr.rel (0) target = $region41
    $region40: #{tpu_custom_call.1} parent=1 // pred_region
      %1088 = dma.done [#allocation4], 32
    $region41: #{tpu_custom_call.1} parent=1 // pred_fallthru
      _
    %1089 = vsyncpa [#allocation3], 1
    %1090 = vsyncpa [#allocation4], 1

</llo_original>
